<compile_context>
chip_gen: v5e
topology: v5e:2x2
jax: 0.10.0
libtpu: 0.0.40
codegen_flags: <defaults>
</compile_context>

<pallas_src>
import jax
import jax.numpy as jnp
from jax.experimental import pallas as pl
from jax.experimental.pallas import tpu as pltpu

SUBLANE = 8


def _round_up(x, m):
    return (x + m - 1) // m * m


def _choose_tile(batch, block_b):
    """Pick (tile_rows, padded_batch).

    - tile rows are a multiple of 8 sublanes and at most ~block_b;
    - when the batch is big enough we force >= 2 grid steps so both v7x
      TensorCores get work under dimension_semantics=("parallel",);
    - row padding is bounded by ~8 * num_steps (no round-up-to-full-tile blowup).
    """
    steps = pl.cdiv(batch, block_b)
    if batch > SUBLANE:
        steps = max(steps, 2)
    tb = _round_up(pl.cdiv(batch, steps), SUBLANE)
    b_p = _round_up(batch, tb)
    return tb, b_p


def policy_kernel(x_ref, w1_ref, b1_ref, w2_ref, b2_ref, out_ref):
    x = x_ref[...]                                                    # [tb, obs_dim]
    # Linear 1 + bias + ReLU (MXU matmul, f32 accumulation).
    h = jnp.dot(x, w1_ref[...], preferred_element_type=jnp.float32)  # [tb, hidden]
    h = jnp.maximum(h + b1_ref[...], 0.0)
    # Linear 2 + bias.
    logits = jnp.dot(h.astype(w2_ref.dtype), w2_ref[...],
                     preferred_element_type=jnp.float32)              # [tb, act_dim]
    logits = logits + b2_ref[...]
    # Numerically stable softmax over the (unpadded) action dim.
    m = jnp.max(logits, axis=-1, keepdims=True)
    e = jnp.exp(logits - m)
    denom = jnp.sum(e, axis=-1, keepdims=True)
    # EUP vrcp + two Newton steps: ~free and accurate enough for the 1e-5 check.
    r = pl.reciprocal(denom, approx=True)
    r = r * (2.0 - denom * r)
    r = r * (2.0 - denom * r)
    out_ref[...] = (e * r).astype(out_ref.dtype)


def policy_network_forward(obs, w1, b1, w2, b2, *, block_b=1024, use_bf16=False):
    """obs: [B, obs_dim]; w1: [obs_dim, 64]; b1: [64]; w2: [64, act_dim]; b2: [act_dim].

    Set use_bf16=True for large-batch throughput (relax any f32 1e-5 tolerance).
    """
    B, obs_dim = obs.shape
    hidden = w1.shape[1]
    act_dim = w2.shape[1]

    in_dtype = jnp.bfloat16 if use_bf16 else jnp.float32
    x = obs.astype(in_dtype)
    w1 = w1.astype(in_dtype)
    w2 = w2.astype(in_dtype)
    b1 = b1.reshape(1, hidden).astype(jnp.float32)
    b2 = b2.reshape(1, act_dim).astype(jnp.float32)

    tb, b_p = _choose_tile(B, block_b)
    if b_p != B:
        # Only row padding (bounded, small); no lane padding of obs at all.
        x = jnp.pad(x, ((0, b_p - B), (0, 0)))

    const = lambda i: (0, 0)  # weights/biases stay VMEM-resident across batch tiles

    out = pl.pallas_call(
        policy_kernel,
        out_shape=jax.ShapeDtypeStruct((b_p, act_dim), jnp.float32),
        grid=(b_p // tb,),
        in_specs=[
            pl.BlockSpec((tb, obs_dim), lambda i: (i, 0)),   # obs tile streams in
            pl.BlockSpec((obs_dim, hidden), const),          # W1 (resident, full dims)
            pl.BlockSpec((1, hidden), const),                # b1 (resident)
            pl.BlockSpec((hidden, act_dim), const),          # W2 (resident)
            pl.BlockSpec((1, act_dim), const),               # b2 (resident)
        ],
        out_specs=pl.BlockSpec((tb, act_dim), lambda i: (i, 0)),
        compiler_params=pltpu.CompilerParams(
            dimension_semantics=("parallel",)),              # dual-TC on v7x
    )(x, w1, b1, w2, b2)

    return out if b_p == B else out[:B]


def init_params(key, obs_dim, hidden, act_dim):
    # Deterministic init mimicking PyTorch Linear default: U(-1/sqrt(fan_in), 1/sqrt(fan_in)).
    k1, k2, k3, k4 = jax.random.split(key, 4)
    lim1 = 1.0 / jnp.sqrt(obs_dim)
    lim2 = 1.0 / jnp.sqrt(hidden)
    w1 = jax.random.uniform(k1, (obs_dim, hidden), jnp.float32, -lim1, lim1)
    b1 = jax.random.uniform(k2, (1, hidden), jnp.float32, -lim1, lim1)
    w2 = jax.random.uniform(k3, (hidden, act_dim), jnp.float32, -lim2, lim2)
    b2 = jax.random.uniform(k4, (1, act_dim), jnp.float32, -lim2, lim2)
    return w1, b1, w2, b2


if __name__ == "__main__":
    obs_dim, hidden, act_dim, batch = 16, 64, 8, 8

    key = jax.random.PRNGKey(0)
    k_params, k_obs = jax.random.split(key)
    w1, b1, w2, b2 = init_params(k_params, obs_dim, hidden, act_dim)
    obs = jax.random.normal(k_obs, (batch, obs_dim), jnp.float32)

    out = policy_network_forward(obs, w1, b1, w2, b2)
    out = jax.block_until_ready(out)

    # Cross-check against plain-JAX reference of the same math.
    h_ref = jnp.maximum(obs @ w1 + b1, 0.0)
    logits_ref = h_ref @ w2 + b2
    probs_ref = jax.nn.softmax(logits_ref, axis=-1)
    assert out.shape == (batch, act_dim)
    assert jnp.allclose(out, probs_ref, atol=1e-5), "mismatch vs reference"
    assert jnp.allclose(jnp.sum(out, axis=-1), 1.0, atol=1e-5)

    print("KERNEL_OK")
</pallas_src>

<mosaic_0001>
module attributes {stable_mosaic.version = 11 : i64} {
  func.func @policy_kernel(%arg0: i32, %arg1: memref<8x16xf32, #tpu.memory_space<vmem>>, %arg2: memref<16x64xf32, #tpu.memory_space<vmem>>, %arg3: memref<1x64xf32, #tpu.memory_space<vmem>>, %arg4: memref<64x8xf32, #tpu.memory_space<vmem>>, %arg5: memref<1x8xf32, #tpu.memory_space<vmem>>, %arg6: memref<8x8xf32, #tpu.memory_space<vmem>>) attributes {dimension_semantics = [#tpu.dimension_semantics<parallel>], iteration_bounds = array<i64: 1>, scalar_prefetch = 0 : i64, scratch_operands = 0 : i64, tpu.core_type = #tpu.core_type<tc>, window_params = [{transform_indices = @transform_0, window_bounds = array<i64: 8, 16>}, {pipeline_mode = #tpu.pipeline_mode<synchronous>, transform_indices = @transform_1, window_bounds = array<i64: 16, 64>}, {pipeline_mode = #tpu.pipeline_mode<synchronous>, transform_indices = @transform_2, window_bounds = array<i64: 1, 64>}, {pipeline_mode = #tpu.pipeline_mode<synchronous>, transform_indices = @transform_3, window_bounds = array<i64: 64, 8>}, {pipeline_mode = #tpu.pipeline_mode<synchronous>, transform_indices = @transform_4, window_bounds = array<i64: 1, 8>}, {transform_indices = @transform_5, window_bounds = array<i64: 8, 8>}]} {
    %c0 = arith.constant 0 : index
    %c0_0 = arith.constant 0 : index
    %0 = vector.load %arg1[%c0, %c0_0] : memref<8x16xf32, #tpu.memory_space<vmem>>, vector<8x16xf32>
    %c0_1 = arith.constant 0 : index
    %c0_2 = arith.constant 0 : index
    %1 = vector.load %arg2[%c0_1, %c0_2] : memref<16x64xf32, #tpu.memory_space<vmem>>, vector<16x64xf32>
    %cst = arith.constant dense<0.000000e+00> : vector<8x64xf32>
    %2 = tpu.matmul %0, %1, %cst {dimension_numbers = #tpu.dot_dimension_numbers<[1], [0], [0], [1], [0, 0, 1, 1], [], []>} : vector<8x16xf32>, vector<16x64xf32>, vector<8x64xf32> -> vector<8x64xf32>
    %c0_3 = arith.constant 0 : index
    %c0_4 = arith.constant 0 : index
    %3 = vector.load %arg3[%c0_3, %c0_4] : memref<1x64xf32, #tpu.memory_space<vmem>>, vector<1x64xf32>
    %4 = vector.broadcast %3 : vector<1x64xf32> to vector<8x64xf32>
    %5 = arith.addf %2, %4 : vector<8x64xf32>
    %cst_5 = arith.constant 0.000000e+00 : f32
    %6 = vector.broadcast %cst_5 : f32 to vector<8x64xf32>
    %7 = arith.maximumf %5, %6 : vector<8x64xf32>
    %c0_6 = arith.constant 0 : index
    %c0_7 = arith.constant 0 : index
    %8 = vector.load %arg4[%c0_6, %c0_7] : memref<64x8xf32, #tpu.memory_space<vmem>>, vector<64x8xf32>
    %cst_8 = arith.constant dense<0.000000e+00> : vector<8x8xf32>
    %9 = tpu.matmul %7, %8, %cst_8 {dimension_numbers = #tpu.dot_dimension_numbers<[1], [0], [0], [1], [0, 0, 1, 1], [], []>} : vector<8x64xf32>, vector<64x8xf32>, vector<8x8xf32> -> vector<8x8xf32>
    %c0_9 = arith.constant 0 : index
    %c0_10 = arith.constant 0 : index
    %10 = vector.load %arg5[%c0_9, %c0_10] : memref<1x8xf32, #tpu.memory_space<vmem>>, vector<1x8xf32>
    %11 = vector.broadcast %10 : vector<1x8xf32> to vector<8x8xf32>
    %12 = arith.addf %9, %11 : vector<8x8xf32>
    %cst_11 = arith.constant dense<0xFF800000> : vector<8xf32>
    %13 = vector.multi_reduction <maximumf>, %12, %cst_11 [1] : vector<8x8xf32> to vector<8xf32>
    %14 = vector.shape_cast %13 : vector<8xf32> to vector<8x1xf32>
    %15 = vector.broadcast %14 : vector<8x1xf32> to vector<8x8xf32>
    %16 = arith.subf %12, %15 : vector<8x8xf32>
    %17 = math.exp %16 : vector<8x8xf32>
    %cst_12 = arith.constant dense<0.000000e+00> : vector<8xf32>
    %18 = vector.multi_reduction <add>, %17, %cst_12 [1] : vector<8x8xf32> to vector<8xf32>
    %19 = vector.shape_cast %18 : vector<8xf32> to vector<8x1xf32>
    %20 = tpu.reciprocal %19 {approx = true} : vector<8x1xf32> -> vector<8x1xf32>
    %21 = arith.mulf %19, %20 : vector<8x1xf32>
    %cst_13 = arith.constant 2.000000e+00 : f32
    %22 = vector.broadcast %cst_13 : f32 to vector<8x1xf32>
    %23 = arith.subf %22, %21 : vector<8x1xf32>
    %24 = arith.mulf %20, %23 : vector<8x1xf32>
    %25 = arith.mulf %19, %24 : vector<8x1xf32>
    %cst_14 = arith.constant 2.000000e+00 : f32
    %26 = vector.broadcast %cst_14 : f32 to vector<8x1xf32>
    %27 = arith.subf %26, %25 : vector<8x1xf32>
    %28 = arith.mulf %24, %27 : vector<8x1xf32>
    %29 = vector.broadcast %28 : vector<8x1xf32> to vector<8x8xf32>
    %30 = arith.mulf %17, %29 : vector<8x8xf32>
    %c0_15 = arith.constant 0 : index
    %c0_16 = arith.constant 0 : index
    %31 = vector.load %arg6[%c0_15, %c0_16] : memref<8x8xf32, #tpu.memory_space<vmem>>, vector<8x8xf32>
    tpu.vector_store %arg6[%c0_15, %c0_16], %30 {strides = array<i32>} : memref<8x8xf32, #tpu.memory_space<vmem>>, vector<8x8xf32>,
    return
  }
  func.func @transform_0(%arg0: i32) -> (i32, i32) {
    %c0_i32 = arith.constant 0 : i32
    %c0_i32_0 = arith.constant 0 : i32
    return %arg0, %c0_i32 : i32, i32
  }
  func.func @transform_1(%arg0: i32) -> (i32, i32) {
    %c0_i32 = arith.constant 0 : i32
    %c0_i32_0 = arith.constant 0 : i32
    %c0_i32_1 = arith.constant 0 : i32
    return %c0_i32, %c0_i32_0 : i32, i32
  }
  func.func @transform_2(%arg0: i32) -> (i32, i32) {
    %c0_i32 = arith.constant 0 : i32
    %c0_i32_0 = arith.constant 0 : i32
    %c0_i32_1 = arith.constant 0 : i32
    return %c0_i32, %c0_i32_0 : i32, i32
  }
  func.func @transform_3(%arg0: i32) -> (i32, i32) {
    %c0_i32 = arith.constant 0 : i32
    %c0_i32_0 = arith.constant 0 : i32
    %c0_i32_1 = arith.constant 0 : i32
    return %c0_i32, %c0_i32_0 : i32, i32
  }
  func.func @transform_4(%arg0: i32) -> (i32, i32) {
    %c0_i32 = arith.constant 0 : i32
    %c0_i32_0 = arith.constant 0 : i32
    %c0_i32_1 = arith.constant 0 : i32
    return %c0_i32, %c0_i32_0 : i32, i32
  }
  func.func @transform_5(%arg0: i32) -> (i32, i32) {
    %c0_i32 = arith.constant 0 : i32
    %c0_i32_0 = arith.constant 0 : i32
    return %arg0, %c0_i32 : i32, i32
  }
}

</mosaic_0001>

<llo_original>
// kernel: tpu_custom_call.1
$region0: #{tpu_custom_call.1}
  #allocation0 [shape = 'u32[]', space=smem, size = 0x4, offset = 0x4, fixed_abs, tag = 'smem constant byte address 0x4 - core index']
  #allocation1 [shape = 'u32[72,128]{1,0:T(1,128)}', space=vmem, size = 0x9000, scoped, tag = 'internal scratch']
  %s0 = inlined_call_operand.vmem [shape: f32[8,16], index: 0, kind: input, shape index: {}]
  %s1 = inlined_call_operand.vmem [shape: f32[16,64], index: 1, kind: input, shape index: {}]
  %s2 = inlined_call_operand.vmem [shape: f32[1,64], index: 2, kind: input, shape index: {}]
  %s3 = inlined_call_operand.vmem [shape: f32[64,8], index: 3, kind: input, shape index: {}]
  %s4 = inlined_call_operand.vmem [shape: f32[1,8], index: 4, kind: input, shape index: {}]
  %s5 = inlined_call_operand.hbm [shape: f32[8,8], index: 5, kind: output, shape index: {}]
  %s6 = sld [smem:[#allocation0]]
  $region30: #{tpu_custom_call.1} parent=0
    _
  %s8 = ssub.s32 1, %s6
  %s9 = scalar_select 0, %s8, %s6
  $region1: #{tpu_custom_call.1} parent=0
    #allocation2 [shape = 'u8[4096]{0}', space=vmem, size = 0x1000, scoped, tag = 'output window, operand 0, single buffered']
    #allocation3 [shape = 's32[1]{0}', space=sflag, size = 0x4, scoped, tag = 'scoped memory for tpu_custom_call.1']
    %10 = vsyncpa [#allocation3], 0
    // Predicated region
    $region2: #{tpu_custom_call.1} parent=1 // pred_check
      _
    $region3: #{tpu_custom_call.1} parent=1 // pred_check_branch
      %12 = sbr.rel (0) target = $region5
    $region4: #{tpu_custom_call.1} parent=1 // pred_region
      _
    $region5: #{tpu_custom_call.1} parent=1 // pred_fallthru
      _
    // Predicated region
    $region6: #{tpu_custom_call.1} parent=1 // pred_check
      _
    $region7: #{tpu_custom_call.1} parent=1 // pred_check_branch
      %14 = sbr.rel (0) target = $region9
    $region8: #{tpu_custom_call.1} parent=1 // pred_region
      _
    $region9: #{tpu_custom_call.1} parent=1 // pred_fallthru
      _
    // Predicated region
    $region10: #{tpu_custom_call.1} parent=1 // pred_check
      _
    $region11: #{tpu_custom_call.1} parent=1 // pred_check_branch
      %16 = sbr.rel (0) target = $region13
    $region12: #{tpu_custom_call.1} parent=1 // pred_region
      _
    $region13: #{tpu_custom_call.1} parent=1 // pred_fallthru
      _
    // Predicated region
    $region14: #{tpu_custom_call.1} parent=1 // pred_check
      _
    $region15: #{tpu_custom_call.1} parent=1 // pred_check_branch
      %18 = sbr.rel (0) target = $region17
    $region16: #{tpu_custom_call.1} parent=1 // pred_region
      _
    $region17: #{tpu_custom_call.1} parent=1 // pred_fallthru
      _
    // Predicated region
    $region18: #{tpu_custom_call.1} parent=1 // pred_check
      _
    $region19: #{tpu_custom_call.1} parent=1 // pred_check_branch
      %20 = sbr.rel (0) target = $region21
    $region20: #{tpu_custom_call.1} parent=1 // pred_region
      _
    $region21: #{tpu_custom_call.1} parent=1 // pred_fallthru
      _
    %v21 = vld [vmem:[%s0] sm:$0xff]
    %v22 = vld [vmem:[%s1] sm:$0xff]
    %v23 = vld [vmem:[%s1 + $0x8] sm:$0xff]
    %v24 = vld [vmem:[%s2] sm:$0x1]
    %v26 = vperm.slane %v24, 0
    %vm28 = vcmask 130048
    %v30 = vsel %vm28, %v21, 0
    %32 = vmatpush.msra.mxu0 0.0
    %33 = vmatpush.msra.mxu0 0.0
    %34 = vmatpush.msra.mxu0 0.0
    %35 = vmatpush.msra.mxu0 0.0
    %36 = vmatpush.msra.mxu0 0.0
    %37 = vmatpush.msra.mxu0 0.0
    %38 = vmatpush.msra.mxu0 0.0
    %39 = vmatpush.msra.mxu0 0.0
    %40 = vmatpush.msra.mxu0 0.0
    %41 = vmatpush.msra.mxu0 0.0
    %42 = vmatpush.msra.mxu0 0.0
    %43 = vmatpush.msra.mxu0 0.0
    %44 = vmatpush.msra.mxu0 0.0
    %45 = vmatpush.msra.mxu0 0.0
    %46 = vmatpush.msra.mxu0 %v23
    %47 = vmatpush.msra.mxu0 %v22
    %48 = vmatmul.f32.gmra.mxu0 %v30
    %v49 = vpop.f32.mrf.mxu0
    %v50 = vadd.f32 %v26, %v49
    %51 = vdwg.mxu0
    %v52 = vmax.f32 %v50, 0.0
    %v53 = vld [vmem:[%s3] sm:$0xff]
    %v54 = vld [vmem:[%s3 + $0x8] sm:$0xff]
    %v55 = vld [vmem:[%s3 + $0x10] sm:$0xff]
    %v56 = vld [vmem:[%s3 + $0x18] sm:$0xff]
    %v57 = vld [vmem:[%s3 + $0x20] sm:$0xff]
    %v58 = vld [vmem:[%s3 + $0x28] sm:$0xff]
    %v59 = vld [vmem:[%s3 + $0x30] sm:$0xff]
    %v60 = vld [vmem:[%s3 + $0x38] sm:$0xff]
    %v61 = vld [vmem:[%s4] sm:$0x1]
    %v63 = vperm.slane %v61, 0
    %vm65 = vcmask 523264
    %v67 = vsel %vm65, %v52, 0
    %69 = vmatpush.msra.mxu0 0.0
    %70 = vmatpush.msra.mxu0 0.0
    %71 = vmatpush.msra.mxu0 0.0
    %72 = vmatpush.msra.mxu0 0.0
    %73 = vmatpush.msra.mxu0 0.0
    %74 = vmatpush.msra.mxu0 0.0
    %75 = vmatpush.msra.mxu0 0.0
    %76 = vmatpush.msra.mxu0 0.0
    %77 = vmatpush.msra.mxu0 %v60
    %78 = vmatpush.msra.mxu0 %v59
    %79 = vmatpush.msra.mxu0 %v58
    %80 = vmatpush.msra.mxu0 %v57
    %81 = vmatpush.msra.mxu0 %v56
    %82 = vmatpush.msra.mxu0 %v55
    %83 = vmatpush.msra.mxu0 %v54
    %84 = vmatpush.msra.mxu0 %v53
    %85 = vmatmul.f32.gmra.mxu0 %v67
    %v86 = vpop.f32.mrf.mxu0
    %v87 = vadd.f32 %v63, %v86
    %88 = vdwg.mxu0
    %vm89 = vcmask 64512
    %v90 = vsel %vm89, %v87, -inf
    %91 = vmax.xlane.f32.xlu0 %v90
    %v92 = vpop.xlane.xlu0 %91
    %v93 = vsub.f32 %v87, %v92
    %v94 = vmul.f32 %v93, 1.442695
    %v95 = vpow.pop %v94
    %v96 = vsel %vm89, %v95, 0.0
    %97 = vadd.xlane.f32.xlu0 %v96
    %v98 = vpop.xlane.xlu0 %97
    %v99 = vrcp.pop %v98
    %v100 = vmul.f32 %v98, %v99
    %v101 = vsub.f32 2.0, %v100
    %v102 = vmul.f32 %v99, %v101
    %v103 = vmul.f32 %v98, %v102
    %v104 = vsub.f32 2.0, %v103
    %v105 = vmul.f32 %v102, %v104
    %v106 = vmul.f32 %v95, %v105
    %107 = vst.msk [vmem:[#allocation2] sm:$0xff] %vm89, %v106
    // Predicated region
    $region22: #{tpu_custom_call.1} parent=1 // pred_check
      _
    $region23: #{tpu_custom_call.1} parent=1 // pred_check_branch
      %109 = sbr.rel (0) target = $region25
    $region24: #{tpu_custom_call.1} parent=1 // pred_region
      %111 = vsyncadd [#allocation3], 0
      %s113 = sshll.u32 [#allocation2], 4
      %s114 = int_to_ptr.vmem [resolvable:$true] %s113
      %s115 = sshll.u32 %s5, 4
      %s116 = int_to_ptr.hbm [resolvable:$true] %s115
      %118 = dma.vmem_to_hbm [thread:$0]  %s114, 128, %s116, [#allocation3]
    $region25: #{tpu_custom_call.1} parent=1 // pred_fallthru
      _
    // Predicated region
    $region26: #{tpu_custom_call.1} parent=1 // pred_check
      _
    $region27: #{tpu_custom_call.1} parent=1 // pred_check_branch
      %120 = sbr.rel (0) target = $region29
    $region28: #{tpu_custom_call.1} parent=1 // pred_region
      %122 = dma.done [#allocation3], 128
    $region29: #{tpu_custom_call.1} parent=1 // pred_fallthru
      _
    %123 = vsyncpa [#allocation3], 1

</llo_original>
